<compile_context>
chip_gen: v6e
topology: v6e:2x2x1
jax: 0.10.0
libtpu: 0.0.40
codegen_flags: <defaults>
</compile_context>

<pallas_src>
import math
import functools

import jax
import jax.numpy as jnp
from jax.experimental import pallas as pl
from jax.experimental.pallas import tpu as pltpu


# ---------------------------------------------------------------------------
# Scalar "delayed" machinery reproduced from the PyTorch module
# ---------------------------------------------------------------------------
def _closest_integer(v: float) -> int:
    return int(round(v))


def _upper_integer(v: float) -> int:
    return int(math.ceil(v))


def _reset_add_pixels(pixels_in_xy, length_in_xy, length_out_xy):
    """AbstractElement._reset_add_pixels (the delayed fn launched by forward).

    pixels/lengths use the module's (x, y) convention, i.e. (W, H)."""
    px_in_x, px_in_y = pixels_in_xy
    lin_x, lin_y = length_in_xy
    lout_x, lout_y = length_out_xy
    add_x = _upper_integer(_closest_integer((lout_x - lin_x) * px_in_x / lin_x) / 2)
    add_y = _upper_integer(_closest_integer((lout_y - lin_y) * px_in_y / lin_y) / 2)
    return add_x, add_y


# ---------------------------------------------------------------------------
# Pallas kernel: zero-padded pass-through of the optical field
# ---------------------------------------------------------------------------
def _pad_field_kernel(x_ref, o_ref, *, pad_y, pad_x):
    # One grid step = tile_bc (H, W) planes -> tile_bc padded (Hp, Wp) planes.
    # Build the padded tile in registers (concats on the idle XLU) and issue a
    # single lane-dense, unmasked full-block store.
    x = x_ref[...]                                 # (t, H, W)
    t, H, W = x.shape
    dt = x.dtype
    if pad_x > 0:
        zx = jnp.zeros((t, H, pad_x), dt)
        x = jnp.concatenate([zx, x, zx], axis=2)   # (t, H, Wp)
    if pad_y > 0:
        Wp = W + 2 * pad_x
        zy = jnp.zeros((t, pad_y, Wp), dt)
        x = jnp.concatenate([zy, x, zy], axis=1)   # (t, Hp, Wp)
    o_ref[...] = x


# ---------------------------------------------------------------------------
# Hardware-aware sizing
# ---------------------------------------------------------------------------
def _tpu_vmem_and_cores():
    """Best-effort query of per-core VMEM capacity and TensorCore count."""
    vmem_cap = 64 * 1024 * 1024        # conservative default (v7x per-TC)
    num_cores = 1
    try:
        info = pltpu.get_tpu_info()
        cap = getattr(info, "vmem_capacity_bytes", None)
        if cap:
            vmem_cap = int(cap)
        for name in ("num_cores", "core_count", "num_tensorcores",
                     "tensorcore_count"):
            v = getattr(info, name, None)
            if isinstance(v, int) and v > 0:
                num_cores = v
                break
    except Exception:
        pass
    return vmem_cap, num_cores


# Below this output size, XLA's pad copy beats the pallas_call launch cost.
_XLA_FALLBACK_MAX_BYTES = 256 * 1024


# ---------------------------------------------------------------------------
# Forward wrapper
# ---------------------------------------------------------------------------
def abstract_spectral_forward(x, pixels_io, length_io):
    """Pallas implementation of the AbstractSpectral element's data path.

    x: (B, C, H, W) optical field (NCHW); real or complex dtype.
    pixels_io: dict 'input'/'output' -> (px_x, px_y) ints  [(x, y) == (W, H)]
    length_io: dict 'input'/'output' -> (len_x, len_y) floats

    Returns the field zero-padded according to the element's `_paddings`
    (identity when add_pixels <= 0, matching the module's clamp).
    """
    B, C, H, W = x.shape
    # (x, y) convention: pixels.input.x == W, pixels.input.y == H.
    if tuple(pixels_io["input"]) != (W, H):
        raise ValueError(
            f"pixels.input must be (x, y) = (W, H) = {(W, H)}; "
            f"got {tuple(pixels_io['input'])}")

    # forward() -> delayed.launch() -> _reset_add_pixels
    add_x, add_y = _reset_add_pixels(
        pixels_io["input"], length_io["input"], length_io["output"])
    pad_x = add_x if add_x > 0 else 0   # _padding_x
    pad_y = add_y if add_y > 0 else 0   # _padding_y

    # Fast path: no padding -> identity (skip the HBM round trip).
    if pad_x == 0 and pad_y == 0:
        return x

    Hp = H + 2 * pad_y                  # _total_pixels_y
    Wp = W + 2 * pad_x                  # _total_pixels_x

    # complex fields: interleave (re, im) along the lane axis so the kernel
    # only handles real dtypes and lanes stay dense.
    # TODO(synk): this wrapper interleave costs one XLA shuffle; avoid it by
    # keeping fields stored as interleaved float pairs upstream.
    is_complex = jnp.issubdtype(x.dtype, jnp.complexfloating)
    if is_complex:
        kdt = x.real.dtype
        xk = jnp.stack([x.real, x.imag], axis=-1).reshape(B, C, H, 2 * W)
        W_eff, pad_x_eff, Wp_eff = 2 * W, 2 * pad_x, 2 * Wp
    else:
        kdt = x.dtype
        xk = x
        W_eff, pad_x_eff, Wp_eff = W, pad_x, Wp

    itemsize = jnp.dtype(kdt).itemsize
    out_bytes = B * C * Hp * Wp_eff * itemsize

    vmem_cap, num_cores = _tpu_vmem_and_cores()
    budget = vmem_cap // 2
    if num_cores >= 2:
        budget //= 2                    # conservative if the TCs share VMEM
    vmem_limit = (vmem_cap * 3) // 4

    # double-buffered input + double-buffered output + in-kernel padded temp
    per_plane_bytes = (2 * H * W_eff + 3 * Hp * Wp_eff) * itemsize

    # Small / lane-sparse / oversized-plane fallback: plain XLA pad.
    # TODO(synk): add H-tiling (halo rows only on first/last H tile) for
    # planes too large to fit VMEM even at one plane per step.
    if (Wp_eff < 128) or (out_bytes < _XLA_FALLBACK_MAX_BYTES) \
            or (per_plane_bytes > budget):
        return jnp.pad(x, ((0, 0), (0, 0), (pad_y, pad_y), (pad_x, pad_x)))

    BC = B * C
    xf = xk.reshape(BC, H, W_eff)

    tile_bc = max(1, budget // per_plane_bytes)
    if num_cores >= 2 and BC >= num_cores:
        # keep at least one grid step per TensorCore (v7x)
        tile_bc = min(tile_bc, pl.cdiv(BC, num_cores))
    tile_bc = min(tile_bc, BC)
    grid = (pl.cdiv(BC, tile_bc),)      # partial trailing block handled by Pallas

    kernel = functools.partial(_pad_field_kernel, pad_y=pad_y, pad_x=pad_x_eff)

    def _run(semantics):
        return pl.pallas_call(
            kernel,
            out_shape=jax.ShapeDtypeStruct((BC, Hp, Wp_eff), kdt),
            grid_spec=pltpu.PrefetchScalarGridSpec(
                num_scalar_prefetch=0,
                grid=grid,
                in_specs=[pl.BlockSpec((tile_bc, H, W_eff), lambda i: (i, 0, 0))],
                out_specs=pl.BlockSpec((tile_bc, Hp, Wp_eff), lambda i: (i, 0, 0)),
            ),
            compiler_params=pltpu.CompilerParams(
                dimension_semantics=semantics,
                vmem_limit_bytes=vmem_limit,
            ),
        )(xf)

    out = None
    if num_cores >= 2:
        # Engage both TensorCores on multi-TC chips (plain "parallel" does not
        # actually split the grid across cores); fall back if unsupported.
        try:
            out = _run((pltpu.CORE_PARALLEL,))
        except Exception:
            out = None
    if out is None:
        out = _run(("parallel",))

    out = out.reshape(B, C, Hp, Wp_eff)
    if is_complex:
        out = out.reshape(B, C, Hp, Wp, 2)
        out = jax.lax.complex(out[..., 0], out[..., 1])
    return out


# ---------------------------------------------------------------------------
# Demo / self-check
# ---------------------------------------------------------------------------
if __name__ == "__main__":
    key = jax.random.PRNGKey(0)

    # ---- complex64 optical field (common case) -> Pallas kernel path ----
    #   pixels.input = (64, 64), length 1.0 -> 1.5
    #   add_pixels = ceil(round(0.5 * 64 / 1.0) / 2) = 16 on each axis.
    pixels_io = {"input": (64, 64), "output": (64, 64)}
    length_io = {"input": (1.0, 1.0), "output": (1.5, 1.5)}
    B, C, H, W = 2, 4, 64, 64
    kr, ki = jax.random.split(key)
    x = (jax.random.normal(kr, (B, C, H, W), jnp.float32)
         + 1j * jax.random.normal(ki, (B, C, H, W), jnp.float32)
         ).astype(jnp.complex64)

    y = jax.block_until_ready(abstract_spectral_forward(x, pixels_io, length_io))

    add_x, add_y = _reset_add_pixels(
        pixels_io["input"], length_io["input"], length_io["output"])
    px, py = max(add_x, 0), max(add_y, 0)
    ref = jnp.pad(x, ((0, 0), (0, 0), (py, py), (px, px)))
    assert y.shape == ref.shape and y.dtype == ref.dtype, (y.shape, y.dtype)
    assert jnp.allclose(y, ref), "mismatch vs reference padding (complex path)"

    # ---- small float32 field -> XLA-pad fallback path ----
    pix2 = {"input": (16, 16), "output": (16, 16)}
    x2 = jax.random.normal(key, (2, 4, 16, 16), dtype=jnp.float32)
    y2 = jax.block_until_ready(abstract_spectral_forward(x2, pix2, length_io))
    ref2 = jnp.pad(x2, ((0, 0), (0, 0), (4, 4), (4, 4)))
    assert y2.shape == ref2.shape and jnp.allclose(y2, ref2), "fallback mismatch"

    # ---- pad == 0 -> identity fast path ----
    y0 = abstract_spectral_forward(
        x2, pix2, {"input": (1.0, 1.0), "output": (1.0, 1.0)})
    y0 = jax.block_until_ready(y0)
    assert y0.shape == x2.shape and jnp.allclose(y0, x2), "identity path mismatch"

    # TODO(synk): the PyTorch forward returns None (pure state update); the
    # wavelength SpaceParam / accuracy / logger / delayed bookkeeping carry no
    # tensor compute to port into the kernel.
    print("KERNEL_OK")
</pallas_src>

<mosaic_0001>
module attributes {stable_mosaic.version = 11 : i64} {
  func.func @_pad_field_kernel(%arg0: i32, %arg1: memref<8x64x128xf32, #tpu.memory_space<vmem>>, %arg2: memref<8x96x192xf32, #tpu.memory_space<vmem>>) attributes {dimension_semantics = [#tpu.dimension_semantics<parallel>], iteration_bounds = array<i64: 1>, scalar_prefetch = 0 : i64, scratch_operands = 0 : i64, tpu.core_type = #tpu.core_type<tc>, window_params = [{transform_indices = @transform_0, window_bounds = array<i64: 8, 64, 128>}, {transform_indices = @transform_1, window_bounds = array<i64: 8, 96, 192>}]} {
    %c0 = arith.constant 0 : index
    %c0_0 = arith.constant 0 : index
    %c0_1 = arith.constant 0 : index
    %0 = vector.load %arg1[%c0, %c0_0, %c0_1] : memref<8x64x128xf32, #tpu.memory_space<vmem>>, vector<8x64x128xf32>
    %cst = arith.constant 0.000000e+00 : f32
    %1 = vector.broadcast %cst : f32 to vector<8x64x32xf32>
    %2 = tpu.concatenate %1, %0, %1 in 2 : vector<8x64x32xf32>, vector<8x64x128xf32>, vector<8x64x32xf32> -> vector<8x64x192xf32>
    %cst_2 = arith.constant 0.000000e+00 : f32
    %3 = vector.broadcast %cst_2 : f32 to vector<8x16x192xf32>
    %4 = tpu.concatenate %3, %2, %3 in 1 : vector<8x16x192xf32>, vector<8x64x192xf32>, vector<8x16x192xf32> -> vector<8x96x192xf32>
    %c0_3 = arith.constant 0 : index
    %c0_4 = arith.constant 0 : index
    %c0_5 = arith.constant 0 : index
    %5 = vector.load %arg2[%c0_3, %c0_4, %c0_5] : memref<8x96x192xf32, #tpu.memory_space<vmem>>, vector<8x96x192xf32>
    tpu.vector_store %arg2[%c0_3, %c0_4, %c0_5], %4 {strides = array<i32>} : memref<8x96x192xf32, #tpu.memory_space<vmem>>, vector<8x96x192xf32>,
    return
  }
  func.func @transform_0(%arg0: i32) -> (i32, i32, i32) {
    %c0_i32 = arith.constant 0 : i32
    %c0_i32_0 = arith.constant 0 : i32
    %c0_i32_1 = arith.constant 0 : i32
    return %arg0, %c0_i32, %c0_i32_0 : i32, i32, i32
  }
  func.func @transform_1(%arg0: i32) -> (i32, i32, i32) {
    %c0_i32 = arith.constant 0 : i32
    %c0_i32_0 = arith.constant 0 : i32
    %c0_i32_1 = arith.constant 0 : i32
    return %arg0, %c0_i32, %c0_i32_0 : i32, i32, i32
  }
}

</mosaic_0001>

<llo_original>
// kernel: tpu_custom_call.1
$region0: #{tpu_custom_call.1}
  #allocation0 [shape = 'u32[]', space=smem, size = 0x4, offset = 0x4, fixed_abs, tag = 'smem constant byte address 0x4 - core index']
  #allocation1 [shape = 'u32[144,128]{1,0:T(1,128)}', space=vmem, size = 0x12000, scoped, tag = 'internal scratch']
  %s0 = inlined_call_operand.hbm [shape: f32[8,64,128], index: 0, kind: input, shape index: {}]
  %s1 = inlined_call_operand.hbm [shape: f32[8,96,192], index: 1, kind: output, shape index: {}]
  %s2 = sld [smem:[#allocation0]]
  $region18: #{tpu_custom_call.1} parent=0
    _
  %s4 = ssub.s32 1, %s2
  %s5 = scalar_select 0, %s4, %s2
  $region1: #{tpu_custom_call.1} parent=0
    #allocation2 [shape = 'u8[262144]{0}', space=vmem, size = 0x40000, scoped, tag = 'input window, operand 0, single buffered']
    #allocation3 [shape = 's32[1]{0}', space=sflag, size = 0x4, scoped, tag = 'scoped memory for tpu_custom_call.1']
    #allocation4 [shape = 's32[1]{0}', space=sflag, size = 0x4, scoped, tag = 'scoped memory for tpu_custom_call.1']
    #allocation5 [shape = 'u8[786432]{0}', space=vmem, size = 0xc0000, scoped, tag = 'output window, operand 0, single buffered']
    %6 = vsyncpa [#allocation3], 0
    %7 = vsyncpa [#allocation4], 0
    // Predicated region
    $region2: #{tpu_custom_call.1} parent=1 // pred_check
      _
    $region3: #{tpu_custom_call.1} parent=1 // pred_check_branch
      %9 = sbr.rel (0) target = $region5
    $region4: #{tpu_custom_call.1} parent=1 // pred_region
      %s11 = ssub.s32 8192, 8192
      %12 = vsyncadd [#allocation3], %s11
      %s13 = sshll.u32 [#allocation2], 4
      %s14 = int_to_ptr.vmem [resolvable:$true] %s13
      %19 = dma.hbm_to_vmem [thread:$0]  %s0, 8192, %s14, [#allocation3], 128, 128, 8
    $region5: #{tpu_custom_call.1} parent=1 // pred_fallthru
      _
    // Predicated region
    $region6: #{tpu_custom_call.1} parent=1 // pred_check
      _
    $region7: #{tpu_custom_call.1} parent=1 // pred_check_branch
      %21 = sbr.rel (0) target = $region9
    $region8: #{tpu_custom_call.1} parent=1 // pred_region
      %22 = dma.done [#allocation3], 8192
    $region9: #{tpu_custom_call.1} parent=1 // pred_fallthru
      _
    %v23 = vld [vmem:[#allocation2] sm:$0xff]
    %v24 = vld [vmem:[#allocation2 + $0x8] sm:$0xff]
    %v25 = vld [vmem:[#allocation2 + $0x10] sm:$0xff]
    %v26 = vld [vmem:[#allocation2 + $0x18] sm:$0xff]
    %v27 = vld [vmem:[#allocation2 + $0x20] sm:$0xff]
    %v28 = vld [vmem:[#allocation2 + $0x28] sm:$0xff]
    %v29 = vld [vmem:[#allocation2 + $0x30] sm:$0xff]
    %v30 = vld [vmem:[#allocation2 + $0x38] sm:$0xff]
    %v31 = vld [vmem:[#allocation2 + $0x40] sm:$0xff]
    %v32 = vld [vmem:[#allocation2 + $0x48] sm:$0xff]
    %v33 = vld [vmem:[#allocation2 + $0x50] sm:$0xff]
    %v34 = vld [vmem:[#allocation2 + $0x58] sm:$0xff]
    %v35 = vld [vmem:[#allocation2 + $0x60] sm:$0xff]
    %v36 = vld [vmem:[#allocation2 + $0x68] sm:$0xff]
    %v37 = vld [vmem:[#allocation2 + $0x70] sm:$0xff]
    %v38 = vld [vmem:[#allocation2 + $0x78] sm:$0xff]
    %v39 = vld [vmem:[#allocation2 + $0x80] sm:$0xff]
    %v40 = vld [vmem:[#allocation2 + $0x88] sm:$0xff]
    %v41 = vld [vmem:[#allocation2 + $0x90] sm:$0xff]
    %v42 = vld [vmem:[#allocation2 + $0x98] sm:$0xff]
    %v43 = vld [vmem:[#allocation2 + $0xa0] sm:$0xff]
    %v44 = vld [vmem:[#allocation2 + $0xa8] sm:$0xff]
    %v45 = vld [vmem:[#allocation2 + $0xb0] sm:$0xff]
    %v46 = vld [vmem:[#allocation2 + $0xb8] sm:$0xff]
    %v47 = vld [vmem:[#allocation2 + $0xc0] sm:$0xff]
    %v48 = vld [vmem:[#allocation2 + $0xc8] sm:$0xff]
    %v49 = vld [vmem:[#allocation2 + $0xd0] sm:$0xff]
    %v50 = vld [vmem:[#allocation2 + $0xd8] sm:$0xff]
    %v51 = vld [vmem:[#allocation2 + $0xe0] sm:$0xff]
    %v52 = vld [vmem:[#allocation2 + $0xe8] sm:$0xff]
    %v53 = vld [vmem:[#allocation2 + $0xf0] sm:$0xff]
    %v54 = vld [vmem:[#allocation2 + $0xf8] sm:$0xff]
    %v55 = vld [vmem:[#allocation2 + $0x100] sm:$0xff]
    %v56 = vld [vmem:[#allocation2 + $0x108] sm:$0xff]
    %v57 = vld [vmem:[#allocation2 + $0x110] sm:$0xff]
    %v58 = vld [vmem:[#allocation2 + $0x118] sm:$0xff]
    %v59 = vld [vmem:[#allocation2 + $0x120] sm:$0xff]
    %v60 = vld [vmem:[#allocation2 + $0x128] sm:$0xff]
    %v61 = vld [vmem:[#allocation2 + $0x130] sm:$0xff]
    %v62 = vld [vmem:[#allocation2 + $0x138] sm:$0xff]
    %v63 = vld [vmem:[#allocation2 + $0x140] sm:$0xff]
    %v64 = vld [vmem:[#allocation2 + $0x148] sm:$0xff]
    %v65 = vld [vmem:[#allocation2 + $0x150] sm:$0xff]
    %v66 = vld [vmem:[#allocation2 + $0x158] sm:$0xff]
    %v67 = vld [vmem:[#allocation2 + $0x160] sm:$0xff]
    %v68 = vld [vmem:[#allocation2 + $0x168] sm:$0xff]
    %v69 = vld [vmem:[#allocation2 + $0x170] sm:$0xff]
    %v70 = vld [vmem:[#allocation2 + $0x178] sm:$0xff]
    %v71 = vld [vmem:[#allocation2 + $0x180] sm:$0xff]
    %v72 = vld [vmem:[#allocation2 + $0x188] sm:$0xff]
    %v73 = vld [vmem:[#allocation2 + $0x190] sm:$0xff]
    %v74 = vld [vmem:[#allocation2 + $0x198] sm:$0xff]
    %v75 = vld [vmem:[#allocation2 + $0x1a0] sm:$0xff]
    %v76 = vld [vmem:[#allocation2 + $0x1a8] sm:$0xff]
    %v77 = vld [vmem:[#allocation2 + $0x1b0] sm:$0xff]
    %v78 = vld [vmem:[#allocation2 + $0x1b8] sm:$0xff]
    %v79 = vld [vmem:[#allocation2 + $0x1c0] sm:$0xff]
    %v80 = vld [vmem:[#allocation2 + $0x1c8] sm:$0xff]
    %v81 = vld [vmem:[#allocation2 + $0x1d0] sm:$0xff]
    %v82 = vld [vmem:[#allocation2 + $0x1d8] sm:$0xff]
    %v83 = vld [vmem:[#allocation2 + $0x1e0] sm:$0xff]
    %v84 = vld [vmem:[#allocation2 + $0x1e8] sm:$0xff]
    %v85 = vld [vmem:[#allocation2 + $0x1f0] sm:$0xff]
    %v86 = vld [vmem:[#allocation2 + $0x1f8] sm:$0xff]
    %151 = vrot.lane.b32.xlu0 %v23, 32
    %v152 = vpop.permute.xlu0 %151
    %153 = vrot.lane.b32.xlu0 %v24, 32
    %v154 = vpop.permute.xlu0 %153
    %155 = vrot.lane.b32.xlu0 %v25, 32
    %v156 = vpop.permute.xlu0 %155
    %157 = vrot.lane.b32.xlu0 %v26, 32
    %v158 = vpop.permute.xlu0 %157
    %159 = vrot.lane.b32.xlu0 %v27, 32
    %v160 = vpop.permute.xlu0 %159
    %161 = vrot.lane.b32.xlu0 %v28, 32
    %v162 = vpop.permute.xlu0 %161
    %163 = vrot.lane.b32.xlu0 %v29, 32
    %v164 = vpop.permute.xlu0 %163
    %165 = vrot.lane.b32.xlu0 %v30, 32
    %v166 = vpop.permute.xlu0 %165
    %167 = vrot.lane.b32.xlu0 %v31, 32
    %v168 = vpop.permute.xlu0 %167
    %169 = vrot.lane.b32.xlu0 %v32, 32
    %v170 = vpop.permute.xlu0 %169
    %171 = vrot.lane.b32.xlu0 %v33, 32
    %v172 = vpop.permute.xlu0 %171
    %173 = vrot.lane.b32.xlu0 %v34, 32
    %v174 = vpop.permute.xlu0 %173
    %175 = vrot.lane.b32.xlu0 %v35, 32
    %v176 = vpop.permute.xlu0 %175
    %177 = vrot.lane.b32.xlu0 %v36, 32
    %v178 = vpop.permute.xlu0 %177
    %179 = vrot.lane.b32.xlu0 %v37, 32
    %v180 = vpop.permute.xlu0 %179
    %181 = vrot.lane.b32.xlu0 %v38, 32
    %v182 = vpop.permute.xlu0 %181
    %183 = vrot.lane.b32.xlu0 %v39, 32
    %v184 = vpop.permute.xlu0 %183
    %185 = vrot.lane.b32.xlu0 %v40, 32
    %v186 = vpop.permute.xlu0 %185
    %187 = vrot.lane.b32.xlu0 %v41, 32
    %v188 = vpop.permute.xlu0 %187
    %189 = vrot.lane.b32.xlu0 %v42, 32
    %v190 = vpop.permute.xlu0 %189
    %191 = vrot.lane.b32.xlu0 %v43, 32
    %v192 = vpop.permute.xlu0 %191
    %193 = vrot.lane.b32.xlu0 %v44, 32
    %v194 = vpop.permute.xlu0 %193
    %195 = vrot.lane.b32.xlu0 %v45, 32
    %v196 = vpop.permute.xlu0 %195
    %197 = vrot.lane.b32.xlu0 %v46, 32
    %v198 = vpop.permute.xlu0 %197
    %199 = vrot.lane.b32.xlu0 %v47, 32
    %v200 = vpop.permute.xlu0 %199
    %201 = vrot.lane.b32.xlu0 %v48, 32
    %v202 = vpop.permute.xlu0 %201
    %203 = vrot.lane.b32.xlu0 %v49, 32
    %v204 = vpop.permute.xlu0 %203
    %205 = vrot.lane.b32.xlu0 %v50, 32
    %v206 = vpop.permute.xlu0 %205
    %207 = vrot.lane.b32.xlu0 %v51, 32
    %v208 = vpop.permute.xlu0 %207
    %209 = vrot.lane.b32.xlu0 %v52, 32
    %v210 = vpop.permute.xlu0 %209
    %211 = vrot.lane.b32.xlu0 %v53, 32
    %v212 = vpop.permute.xlu0 %211
    %213 = vrot.lane.b32.xlu0 %v54, 32
    %v214 = vpop.permute.xlu0 %213
    %215 = vrot.lane.b32.xlu0 %v55, 32
    %v216 = vpop.permute.xlu0 %215
    %217 = vrot.lane.b32.xlu0 %v56, 32
    %v218 = vpop.permute.xlu0 %217
    %219 = vrot.lane.b32.xlu0 %v57, 32
    %v220 = vpop.permute.xlu0 %219
    %221 = vrot.lane.b32.xlu0 %v58, 32
    %v222 = vpop.permute.xlu0 %221
    %223 = vrot.lane.b32.xlu0 %v59, 32
    %v224 = vpop.permute.xlu0 %223
    %225 = vrot.lane.b32.xlu0 %v60, 32
    %v226 = vpop.permute.xlu0 %225
    %227 = vrot.lane.b32.xlu0 %v61, 32
    %v228 = vpop.permute.xlu0 %227
    %229 = vrot.lane.b32.xlu0 %v62, 32
    %v230 = vpop.permute.xlu0 %229
    %231 = vrot.lane.b32.xlu0 %v63, 32
    %v232 = vpop.permute.xlu0 %231
    %233 = vrot.lane.b32.xlu0 %v64, 32
    %v234 = vpop.permute.xlu0 %233
    %235 = vrot.lane.b32.xlu0 %v65, 32
    %v236 = vpop.permute.xlu0 %235
    %237 = vrot.lane.b32.xlu0 %v66, 32
    %v238 = vpop.permute.xlu0 %237
    %239 = vrot.lane.b32.xlu0 %v67, 32
    %v240 = vpop.permute.xlu0 %239
    %241 = vrot.lane.b32.xlu0 %v68, 32
    %v242 = vpop.permute.xlu0 %241
    %243 = vrot.lane.b32.xlu0 %v69, 32
    %v244 = vpop.permute.xlu0 %243
    %245 = vrot.lane.b32.xlu0 %v70, 32
    %v246 = vpop.permute.xlu0 %245
    %247 = vrot.lane.b32.xlu0 %v71, 32
    %v248 = vpop.permute.xlu0 %247
    %249 = vrot.lane.b32.xlu0 %v72, 32
    %v250 = vpop.permute.xlu0 %249
    %251 = vrot.lane.b32.xlu0 %v73, 32
    %v252 = vpop.permute.xlu0 %251
    %253 = vrot.lane.b32.xlu0 %v74, 32
    %v254 = vpop.permute.xlu0 %253
    %255 = vrot.lane.b32.xlu0 %v75, 32
    %v256 = vpop.permute.xlu0 %255
    %257 = vrot.lane.b32.xlu0 %v76, 32
    %v258 = vpop.permute.xlu0 %257
    %259 = vrot.lane.b32.xlu0 %v77, 32
    %v260 = vpop.permute.xlu0 %259
    %261 = vrot.lane.b32.xlu0 %v78, 32
    %v262 = vpop.permute.xlu0 %261
    %263 = vrot.lane.b32.xlu0 %v79, 32
    %v264 = vpop.permute.xlu0 %263
    %265 = vrot.lane.b32.xlu0 %v80, 32
    %v266 = vpop.permute.xlu0 %265
    %267 = vrot.lane.b32.xlu0 %v81, 32
    %v268 = vpop.permute.xlu0 %267
    %269 = vrot.lane.b32.xlu0 %v82, 32
    %v270 = vpop.permute.xlu0 %269
    %271 = vrot.lane.b32.xlu0 %v83, 32
    %v272 = vpop.permute.xlu0 %271
    %273 = vrot.lane.b32.xlu0 %v84, 32
    %v274 = vpop.permute.xlu0 %273
    %275 = vrot.lane.b32.xlu0 %v85, 32
    %v276 = vpop.permute.xlu0 %275
    %277 = vrot.lane.b32.xlu0 %v86, 32
    %v278 = vpop.permute.xlu0 %277
    %vm343 = vcmask 261120
    %v344 = vsel %vm343, 0.0, %v152
    %v345 = vsel %vm343, 0.0, %v154
    %v346 = vsel %vm343, 0.0, %v156
    %v347 = vsel %vm343, 0.0, %v158
    %v348 = vsel %vm343, 0.0, %v160
    %v349 = vsel %vm343, 0.0, %v162
    %v350 = vsel %vm343, 0.0, %v164
    %v351 = vsel %vm343, 0.0, %v166
    %v352 = vsel %vm343, 0.0, %v168
    %v353 = vsel %vm343, 0.0, %v170
    %v354 = vsel %vm343, 0.0, %v172
    %v355 = vsel %vm343, 0.0, %v174
    %v356 = vsel %vm343, 0.0, %v176
    %v357 = vsel %vm343, 0.0, %v178
    %v358 = vsel %vm343, 0.0, %v180
    %v359 = vsel %vm343, 0.0, %v182
    %v360 = vsel %vm343, 0.0, %v184
    %v361 = vsel %vm343, 0.0, %v186
    %v362 = vsel %vm343, 0.0, %v188
    %v363 = vsel %vm343, 0.0, %v190
    %v364 = vsel %vm343, 0.0, %v192
    %v365 = vsel %vm343, 0.0, %v194
    %v366 = vsel %vm343, 0.0, %v196
    %v367 = vsel %vm343, 0.0, %v198
    %v368 = vsel %vm343, 0.0, %v200
    %v369 = vsel %vm343, 0.0, %v202
    %v370 = vsel %vm343, 0.0, %v204
    %v371 = vsel %vm343, 0.0, %v206
    %v372 = vsel %vm343, 0.0, %v208
    %v373 = vsel %vm343, 0.0, %v210
    %v374 = vsel %vm343, 0.0, %v212
    %v375 = vsel %vm343, 0.0, %v214
    %v376 = vsel %vm343, 0.0, %v216
    %v377 = vsel %vm343, 0.0, %v218
    %v378 = vsel %vm343, 0.0, %v220
    %v379 = vsel %vm343, 0.0, %v222
    %v380 = vsel %vm343, 0.0, %v224
    %v381 = vsel %vm343, 0.0, %v226
    %v382 = vsel %vm343, 0.0, %v228
    %v383 = vsel %vm343, 0.0, %v230
    %v384 = vsel %vm343, 0.0, %v232
    %v385 = vsel %vm343, 0.0, %v234
    %v386 = vsel %vm343, 0.0, %v236
    %v387 = vsel %vm343, 0.0, %v238
    %v388 = vsel %vm343, 0.0, %v240
    %v389 = vsel %vm343, 0.0, %v242
    %v390 = vsel %vm343, 0.0, %v244
    %v391 = vsel %vm343, 0.0, %v246
    %v392 = vsel %vm343, 0.0, %v248
    %v393 = vsel %vm343, 0.0, %v250
    %v394 = vsel %vm343, 0.0, %v252
    %v395 = vsel %vm343, 0.0, %v254
    %v396 = vsel %vm343, 0.0, %v256
    %v397 = vsel %vm343, 0.0, %v258
    %v398 = vsel %vm343, 0.0, %v260
    %v399 = vsel %vm343, 0.0, %v262
    %v400 = vsel %vm343, 0.0, %v264
    %v401 = vsel %vm343, 0.0, %v266
    %v402 = vsel %vm343, 0.0, %v268
    %v403 = vsel %vm343, 0.0, %v270
    %v404 = vsel %vm343, 0.0, %v272
    %v405 = vsel %vm343, 0.0, %v274
    %v406 = vsel %vm343, 0.0, %v276
    %v407 = vsel %vm343, 0.0, %v278
    %v408 = vsel %vm343, %v152, 0.0
    %v409 = vsel %vm343, %v154, 0.0
    %v410 = vsel %vm343, %v156, 0.0
    %v411 = vsel %vm343, %v158, 0.0
    %v412 = vsel %vm343, %v160, 0.0
    %v413 = vsel %vm343, %v162, 0.0
    %v414 = vsel %vm343, %v164, 0.0
    %v415 = vsel %vm343, %v166, 0.0
    %v416 = vsel %vm343, %v168, 0.0
    %v417 = vsel %vm343, %v170, 0.0
    %v418 = vsel %vm343, %v172, 0.0
    %v419 = vsel %vm343, %v174, 0.0
    %v420 = vsel %vm343, %v176, 0.0
    %v421 = vsel %vm343, %v178, 0.0
    %v422 = vsel %vm343, %v180, 0.0
    %v423 = vsel %vm343, %v182, 0.0
    %v424 = vsel %vm343, %v184, 0.0
    %v425 = vsel %vm343, %v186, 0.0
    %v426 = vsel %vm343, %v188, 0.0
    %v427 = vsel %vm343, %v190, 0.0
    %v428 = vsel %vm343, %v192, 0.0
    %v429 = vsel %vm343, %v194, 0.0
    %v430 = vsel %vm343, %v196, 0.0
    %v431 = vsel %vm343, %v198, 0.0
    %v432 = vsel %vm343, %v200, 0.0
    %v433 = vsel %vm343, %v202, 0.0
    %v434 = vsel %vm343, %v204, 0.0
    %v435 = vsel %vm343, %v206, 0.0
    %v436 = vsel %vm343, %v208, 0.0
    %v437 = vsel %vm343, %v210, 0.0
    %v438 = vsel %vm343, %v212, 0.0
    %v439 = vsel %vm343, %v214, 0.0
    %v440 = vsel %vm343, %v216, 0.0
    %v441 = vsel %vm343, %v218, 0.0
    %v442 = vsel %vm343, %v220, 0.0
    %v443 = vsel %vm343, %v222, 0.0
    %v444 = vsel %vm343, %v224, 0.0
    %v445 = vsel %vm343, %v226, 0.0
    %v446 = vsel %vm343, %v228, 0.0
    %v447 = vsel %vm343, %v230, 0.0
    %v448 = vsel %vm343, %v232, 0.0
    %v449 = vsel %vm343, %v234, 0.0
    %v450 = vsel %vm343, %v236, 0.0
    %v451 = vsel %vm343, %v238, 0.0
    %v452 = vsel %vm343, %v240, 0.0
    %v453 = vsel %vm343, %v242, 0.0
    %v454 = vsel %vm343, %v244, 0.0
    %v455 = vsel %vm343, %v246, 0.0
    %v456 = vsel %vm343, %v248, 0.0
    %v457 = vsel %vm343, %v250, 0.0
    %v458 = vsel %vm343, %v252, 0.0
    %v459 = vsel %vm343, %v254, 0.0
    %v460 = vsel %vm343, %v256, 0.0
    %v461 = vsel %vm343, %v258, 0.0
    %v462 = vsel %vm343, %v260, 0.0
    %v463 = vsel %vm343, %v262, 0.0
    %v464 = vsel %vm343, %v264, 0.0
    %v465 = vsel %vm343, %v266, 0.0
    %v466 = vsel %vm343, %v268, 0.0
    %v467 = vsel %vm343, %v270, 0.0
    %v468 = vsel %vm343, %v272, 0.0
    %v469 = vsel %vm343, %v274, 0.0
    %v470 = vsel %vm343, %v276, 0.0
    %v471 = vsel %vm343, %v278, 0.0
    %472 = vst [vmem:[#allocation5] sm:$0xff] 0.0
    %vm473 = vcmask 523264
    %474 = vst.msk [vmem:[#allocation5 + $0x8] sm:$0xff] %vm473, 0.0
    %475 = vst [vmem:[#allocation5 + $0x10] sm:$0xff] 0.0
    %476 = vst.msk [vmem:[#allocation5 + $0x18] sm:$0xff] %vm473, 0.0
    %477 = vst [vmem:[#allocation5 + $0x20] sm:$0xff] %v344
    %478 = vst.msk [vmem:[#allocation5 + $0x28] sm:$0xff] %vm473, %v408
    %479 = vst [vmem:[#allocation5 + $0x30] sm:$0xff] %v345
    %480 = vst.msk [vmem:[#allocation5 + $0x38] sm:$0xff] %vm473, %v409
    %481 = vst [vmem:[#allocation5 + $0x40] sm:$0xff] %v346
    %482 = vst.msk [vmem:[#allocation5 + $0x48] sm:$0xff] %vm473, %v410
    %483 = vst [vmem:[#allocation5 + $0x50] sm:$0xff] %v347
    %484 = vst.msk [vmem:[#allocation5 + $0x58] sm:$0xff] %vm473, %v411
    %485 = vst [vmem:[#allocation5 + $0x60] sm:$0xff] %v348
    %486 = vst.msk [vmem:[#allocation5 + $0x68] sm:$0xff] %vm473, %v412
    %487 = vst [vmem:[#allocation5 + $0x70] sm:$0xff] %v349
    %488 = vst.msk [vmem:[#allocation5 + $0x78] sm:$0xff] %vm473, %v413
    %489 = vst [vmem:[#allocation5 + $0x80] sm:$0xff] %v350
    %490 = vst.msk [vmem:[#allocation5 + $0x88] sm:$0xff] %vm473, %v414
    %491 = vst [vmem:[#allocation5 + $0x90] sm:$0xff] %v351
    %492 = vst.msk [vmem:[#allocation5 + $0x98] sm:$0xff] %vm473, %v415
    %493 = vst [vmem:[#allocation5 + $0xa0] sm:$0xff] 0.0
    %494 = vst.msk [vmem:[#allocation5 + $0xa8] sm:$0xff] %vm473, 0.0
    %495 = vst [vmem:[#allocation5 + $0xb0] sm:$0xff] 0.0
    %496 = vst.msk [vmem:[#allocation5 + $0xb8] sm:$0xff] %vm473, 0.0
    %497 = vst [vmem:[#allocation5 + $0xc0] sm:$0xff] 0.0
    %498 = vst.msk [vmem:[#allocation5 + $0xc8] sm:$0xff] %vm473, 0.0
    %499 = vst [vmem:[#allocation5 + $0xd0] sm:$0xff] 0.0
    %500 = vst.msk [vmem:[#allocation5 + $0xd8] sm:$0xff] %vm473, 0.0
    %501 = vst [vmem:[#allocation5 + $0xe0] sm:$0xff] %v352
    %502 = vst.msk [vmem:[#allocation5 + $0xe8] sm:$0xff] %vm473, %v416
    %503 = vst [vmem:[#allocation5 + $0xf0] sm:$0xff] %v353
    %504 = vst.msk [vmem:[#allocation5 + $0xf8] sm:$0xff] %vm473, %v417
    %505 = vst [vmem:[#allocation5 + $0x100] sm:$0xff] %v354
    %506 = vst.msk [vmem:[#allocation5 + $0x108] sm:$0xff] %vm473, %v418
    %507 = vst [vmem:[#allocation5 + $0x110] sm:$0xff] %v355
    %508 = vst.msk [vmem:[#allocation5 + $0x118] sm:$0xff] %vm473, %v419
    %509 = vst [vmem:[#allocation5 + $0x120] sm:$0xff] %v356
    %510 = vst.msk [vmem:[#allocation5 + $0x128] sm:$0xff] %vm473, %v420
    %511 = vst [vmem:[#allocation5 + $0x130] sm:$0xff] %v357
    %512 = vst.msk [vmem:[#allocation5 + $0x138] sm:$0xff] %vm473, %v421
    %513 = vst [vmem:[#allocation5 + $0x140] sm:$0xff] %v358
    %514 = vst.msk [vmem:[#allocation5 + $0x148] sm:$0xff] %vm473, %v422
    %515 = vst [vmem:[#allocation5 + $0x150] sm:$0xff] %v359
    %516 = vst.msk [vmem:[#allocation5 + $0x158] sm:$0xff] %vm473, %v423
    %517 = vst [vmem:[#allocation5 + $0x160] sm:$0xff] 0.0
    %518 = vst.msk [vmem:[#allocation5 + $0x168] sm:$0xff] %vm473, 0.0
    %519 = vst [vmem:[#allocation5 + $0x170] sm:$0xff] 0.0
    %520 = vst.msk [vmem:[#allocation5 + $0x178] sm:$0xff] %vm473, 0.0
    %521 = vst [vmem:[#allocation5 + $0x180] sm:$0xff] 0.0
    %522 = vst.msk [vmem:[#allocation5 + $0x188] sm:$0xff] %vm473, 0.0
    %523 = vst [vmem:[#allocation5 + $0x190] sm:$0xff] 0.0
    %524 = vst.msk [vmem:[#allocation5 + $0x198] sm:$0xff] %vm473, 0.0
    %525 = vst [vmem:[#allocation5 + $0x1a0] sm:$0xff] %v360
    %526 = vst.msk [vmem:[#allocation5 + $0x1a8] sm:$0xff] %vm473, %v424
    %527 = vst [vmem:[#allocation5 + $0x1b0] sm:$0xff] %v361
    %528 = vst.msk [vmem:[#allocation5 + $0x1b8] sm:$0xff] %vm473, %v425
    %529 = vst [vmem:[#allocation5 + $0x1c0] sm:$0xff] %v362
    %530 = vst.msk [vmem:[#allocation5 + $0x1c8] sm:$0xff] %vm473, %v426
    %531 = vst [vmem:[#allocation5 + $0x1d0] sm:$0xff] %v363
    %532 = vst.msk [vmem:[#allocation5 + $0x1d8] sm:$0xff] %vm473, %v427
    %533 = vst [vmem:[#allocation5 + $0x1e0] sm:$0xff] %v364
    %534 = vst.msk [vmem:[#allocation5 + $0x1e8] sm:$0xff] %vm473, %v428
    %535 = vst [vmem:[#allocation5 + $0x1f0] sm:$0xff] %v365
    %536 = vst.msk [vmem:[#allocation5 + $0x1f8] sm:$0xff] %vm473, %v429
    %537 = vst [vmem:[#allocation5 + $0x200] sm:$0xff] %v366
    %538 = vst.msk [vmem:[#allocation5 + $0x208] sm:$0xff] %vm473, %v430
    %539 = vst [vmem:[#allocation5 + $0x210] sm:$0xff] %v367
    %540 = vst.msk [vmem:[#allocation5 + $0x218] sm:$0xff] %vm473, %v431
    %541 = vst [vmem:[#allocation5 + $0x220] sm:$0xff] 0.0
    %542 = vst.msk [vmem:[#allocation5 + $0x228] sm:$0xff] %vm473, 0.0
    %543 = vst [vmem:[#allocation5 + $0x230] sm:$0xff] 0.0
    %544 = vst.msk [vmem:[#allocation5 + $0x238] sm:$0xff] %vm473, 0.0
    %545 = vst [vmem:[#allocation5 + $0x240] sm:$0xff] 0.0
    %546 = vst.msk [vmem:[#allocation5 + $0x248] sm:$0xff] %vm473, 0.0
    %547 = vst [vmem:[#allocation5 + $0x250] sm:$0xff] 0.0
    %548 = vst.msk [vmem:[#allocation5 + $0x258] sm:$0xff] %vm473, 0.0
    %549 = vst [vmem:[#allocation5 + $0x260] sm:$0xff] %v368
    %550 = vst.msk [vmem:[#allocation5 + $0x268] sm:$0xff] %vm473, %v432
    %551 = vst [vmem:[#allocation5 + $0x270] sm:$0xff] %v369
    %552 = vst.msk [vmem:[#allocation5 + $0x278] sm:$0xff] %vm473, %v433
    %553 = vst [vmem:[#allocation5 + $0x280] sm:$0xff] %v370
    %554 = vst.msk [vmem:[#allocation5 + $0x288] sm:$0xff] %vm473, %v434
    %555 = vst [vmem:[#allocation5 + $0x290] sm:$0xff] %v371
    %556 = vst.msk [vmem:[#allocation5 + $0x298] sm:$0xff] %vm473, %v435
    %557 = vst [vmem:[#allocation5 + $0x2a0] sm:$0xff] %v372
    %558 = vst.msk [vmem:[#allocation5 + $0x2a8] sm:$0xff] %vm473, %v436
    %559 = vst [vmem:[#allocation5 + $0x2b0] sm:$0xff] %v373
    %560 = vst.msk [vmem:[#allocation5 + $0x2b8] sm:$0xff] %vm473, %v437
    %561 = vst [vmem:[#allocation5 + $0x2c0] sm:$0xff] %v374
    %562 = vst.msk [vmem:[#allocation5 + $0x2c8] sm:$0xff] %vm473, %v438
    %563 = vst [vmem:[#allocation5 + $0x2d0] sm:$0xff] %v375
    %564 = vst.msk [vmem:[#allocation5 + $0x2d8] sm:$0xff] %vm473, %v439
    %565 = vst [vmem:[#allocation5 + $0x2e0] sm:$0xff] 0.0
    %566 = vst.msk [vmem:[#allocation5 + $0x2e8] sm:$0xff] %vm473, 0.0
    %567 = vst [vmem:[#allocation5 + $0x2f0] sm:$0xff] 0.0
    %568 = vst.msk [vmem:[#allocation5 + $0x2f8] sm:$0xff] %vm473, 0.0
    %569 = vst [vmem:[#allocation5 + $0x300] sm:$0xff] 0.0
    %570 = vst.msk [vmem:[#allocation5 + $0x308] sm:$0xff] %vm473, 0.0
    %571 = vst [vmem:[#allocation5 + $0x310] sm:$0xff] 0.0
    %572 = vst.msk [vmem:[#allocation5 + $0x318] sm:$0xff] %vm473, 0.0
    %573 = vst [vmem:[#allocation5 + $0x320] sm:$0xff] %v376
    %574 = vst.msk [vmem:[#allocation5 + $0x328] sm:$0xff] %vm473, %v440
    %575 = vst [vmem:[#allocation5 + $0x330] sm:$0xff] %v377
    %576 = vst.msk [vmem:[#allocation5 + $0x338] sm:$0xff] %vm473, %v441
    %577 = vst [vmem:[#allocation5 + $0x340] sm:$0xff] %v378
    %578 = vst.msk [vmem:[#allocation5 + $0x348] sm:$0xff] %vm473, %v442
    %579 = vst [vmem:[#allocation5 + $0x350] sm:$0xff] %v379
    %580 = vst.msk [vmem:[#allocation5 + $0x358] sm:$0xff] %vm473, %v443
    %581 = vst [vmem:[#allocation5 + $0x360] sm:$0xff] %v380
    %582 = vst.msk [vmem:[#allocation5 + $0x368] sm:$0xff] %vm473, %v444
    %583 = vst [vmem:[#allocation5 + $0x370] sm:$0xff] %v381
    %584 = vst.msk [vmem:[#allocation5 + $0x378] sm:$0xff] %vm473, %v445
    %585 = vst [vmem:[#allocation5 + $0x380] sm:$0xff] %v382
    %586 = vst.msk [vmem:[#allocation5 + $0x388] sm:$0xff] %vm473, %v446
    %587 = vst [vmem:[#allocation5 + $0x390] sm:$0xff] %v383
    %588 = vst.msk [vmem:[#allocation5 + $0x398] sm:$0xff] %vm473, %v447
    %589 = vst [vmem:[#allocation5 + $0x3a0] sm:$0xff] 0.0
    %590 = vst.msk [vmem:[#allocation5 + $0x3a8] sm:$0xff] %vm473, 0.0
    %591 = vst [vmem:[#allocation5 + $0x3b0] sm:$0xff] 0.0
    %592 = vst.msk [vmem:[#allocation5 + $0x3b8] sm:$0xff] %vm473, 0.0
    %593 = vst [vmem:[#allocation5 + $0x3c0] sm:$0xff] 0.0
    %594 = vst.msk [vmem:[#allocation5 + $0x3c8] sm:$0xff] %vm473, 0.0
    %595 = vst [vmem:[#allocation5 + $0x3d0] sm:$0xff] 0.0
    %596 = vst.msk [vmem:[#allocation5 + $0x3d8] sm:$0xff] %vm473, 0.0
    %597 = vst [vmem:[#allocation5 + $0x3e0] sm:$0xff] %v384
    %598 = vst.msk [vmem:[#allocation5 + $0x3e8] sm:$0xff] %vm473, %v448
    %599 = vst [vmem:[#allocation5 + $0x3f0] sm:$0xff] %v385
    %600 = vst.msk [vmem:[#allocation5 + $0x3f8] sm:$0xff] %vm473, %v449
    %601 = vst [vmem:[#allocation5 + $0x400] sm:$0xff] %v386
    %602 = vst.msk [vmem:[#allocation5 + $0x408] sm:$0xff] %vm473, %v450
    %603 = vst [vmem:[#allocation5 + $0x410] sm:$0xff] %v387
    %604 = vst.msk [vmem:[#allocation5 + $0x418] sm:$0xff] %vm473, %v451
    %605 = vst [vmem:[#allocation5 + $0x420] sm:$0xff] %v388
    %606 = vst.msk [vmem:[#allocation5 + $0x428] sm:$0xff] %vm473, %v452
    %607 = vst [vmem:[#allocation5 + $0x430] sm:$0xff] %v389
    %608 = vst.msk [vmem:[#allocation5 + $0x438] sm:$0xff] %vm473, %v453
    %609 = vst [vmem:[#allocation5 + $0x440] sm:$0xff] %v390
    %610 = vst.msk [vmem:[#allocation5 + $0x448] sm:$0xff] %vm473, %v454
    %611 = vst [vmem:[#allocation5 + $0x450] sm:$0xff] %v391
    %612 = vst.msk [vmem:[#allocation5 + $0x458] sm:$0xff] %vm473, %v455
    %613 = vst [vmem:[#allocation5 + $0x460] sm:$0xff] 0.0
    %614 = vst.msk [vmem:[#allocation5 + $0x468] sm:$0xff] %vm473, 0.0
    %615 = vst [vmem:[#allocation5 + $0x470] sm:$0xff] 0.0
    %616 = vst.msk [vmem:[#allocation5 + $0x478] sm:$0xff] %vm473, 0.0
    %617 = vst [vmem:[#allocation5 + $0x480] sm:$0xff] 0.0
    %618 = vst.msk [vmem:[#allocation5 + $0x488] sm:$0xff] %vm473, 0.0
    %619 = vst [vmem:[#allocation5 + $0x490] sm:$0xff] 0.0
    %620 = vst.msk [vmem:[#allocation5 + $0x498] sm:$0xff] %vm473, 0.0
    %621 = vst [vmem:[#allocation5 + $0x4a0] sm:$0xff] %v392
    %622 = vst.msk [vmem:[#allocation5 + $0x4a8] sm:$0xff] %vm473, %v456
    %623 = vst [vmem:[#allocation5 + $0x4b0] sm:$0xff] %v393
    %624 = vst.msk [vmem:[#allocation5 + $0x4b8] sm:$0xff] %vm473, %v457
    %625 = vst [vmem:[#allocation5 + $0x4c0] sm:$0xff] %v394
    %626 = vst.msk [vmem:[#allocation5 + $0x4c8] sm:$0xff] %vm473, %v458
    %627 = vst [vmem:[#allocation5 + $0x4d0] sm:$0xff] %v395
    %628 = vst.msk [vmem:[#allocation5 + $0x4d8] sm:$0xff] %vm473, %v459
    %629 = vst [vmem:[#allocation5 + $0x4e0] sm:$0xff] %v396
    %630 = vst.msk [vmem:[#allocation5 + $0x4e8] sm:$0xff] %vm473, %v460
    %631 = vst [vmem:[#allocation5 + $0x4f0] sm:$0xff] %v397
    %632 = vst.msk [vmem:[#allocation5 + $0x4f8] sm:$0xff] %vm473, %v461
    %633 = vst [vmem:[#allocation5 + $0x500] sm:$0xff] %v398
    %634 = vst.msk [vmem:[#allocation5 + $0x508] sm:$0xff] %vm473, %v462
    %635 = vst [vmem:[#allocation5 + $0x510] sm:$0xff] %v399
    %636 = vst.msk [vmem:[#allocation5 + $0x518] sm:$0xff] %vm473, %v463
    %637 = vst [vmem:[#allocation5 + $0x520] sm:$0xff] 0.0
    %638 = vst.msk [vmem:[#allocation5 + $0x528] sm:$0xff] %vm473, 0.0
    %639 = vst [vmem:[#allocation5 + $0x530] sm:$0xff] 0.0
    %640 = vst.msk [vmem:[#allocation5 + $0x538] sm:$0xff] %vm473, 0.0
    %641 = vst [vmem:[#allocation5 + $0x540] sm:$0xff] 0.0
    %642 = vst.msk [vmem:[#allocation5 + $0x548] sm:$0xff] %vm473, 0.0
    %643 = vst [vmem:[#allocation5 + $0x550] sm:$0xff] 0.0
    %644 = vst.msk [vmem:[#allocation5 + $0x558] sm:$0xff] %vm473, 0.0
    %645 = vst [vmem:[#allocation5 + $0x560] sm:$0xff] %v400
    %646 = vst.msk [vmem:[#allocation5 + $0x568] sm:$0xff] %vm473, %v464
    %647 = vst [vmem:[#allocation5 + $0x570] sm:$0xff] %v401
    %648 = vst.msk [vmem:[#allocation5 + $0x578] sm:$0xff] %vm473, %v465
    %649 = vst [vmem:[#allocation5 + $0x580] sm:$0xff] %v402
    %650 = vst.msk [vmem:[#allocation5 + $0x588] sm:$0xff] %vm473, %v466
    %651 = vst [vmem:[#allocation5 + $0x590] sm:$0xff] %v403
    %652 = vst.msk [vmem:[#allocation5 + $0x598] sm:$0xff] %vm473, %v467
    %653 = vst [vmem:[#allocation5 + $0x5a0] sm:$0xff] %v404
    %654 = vst.msk [vmem:[#allocation5 + $0x5a8] sm:$0xff] %vm473, %v468
    %655 = vst [vmem:[#allocation5 + $0x5b0] sm:$0xff] %v405
    %656 = vst.msk [vmem:[#allocation5 + $0x5b8] sm:$0xff] %vm473, %v469
    %657 = vst [vmem:[#allocation5 + $0x5c0] sm:$0xff] %v406
    %658 = vst.msk [vmem:[#allocation5 + $0x5c8] sm:$0xff] %vm473, %v470
    %659 = vst [vmem:[#allocation5 + $0x5d0] sm:$0xff] %v407
    %660 = vst.msk [vmem:[#allocation5 + $0x5d8] sm:$0xff] %vm473, %v471
    %661 = vst [vmem:[#allocation5 + $0x5e0] sm:$0xff] 0.0
    %662 = vst.msk [vmem:[#allocation5 + $0x5e8] sm:$0xff] %vm473, 0.0
    %663 = vst [vmem:[#allocation5 + $0x5f0] sm:$0xff] 0.0
    %664 = vst.msk [vmem:[#allocation5 + $0x5f8] sm:$0xff] %vm473, 0.0
    // Predicated region
    $region10: #{tpu_custom_call.1} parent=1 // pred_check
      _
    $region11: #{tpu_custom_call.1} parent=1 // pred_check_branch
      %666 = sbr.rel (0) target = $region13
    $region12: #{tpu_custom_call.1} parent=1 // pred_region
      %s668 = ssub.s32 24576, 24576
      %669 = vsyncadd [#allocation4], %s668
      %s670 = sshll.u32 [#allocation5], 4
      %s671 = int_to_ptr.vmem [resolvable:$true] %s670
      %676 = dma.vmem_to_hbm [thread:$0]  %s671, 24576, %s1, [#allocation4], 256, 256, 16
    $region13: #{tpu_custom_call.1} parent=1 // pred_fallthru
      _
    // Predicated region
    $region14: #{tpu_custom_call.1} parent=1 // pred_check
      _
    $region15: #{tpu_custom_call.1} parent=1 // pred_check_branch
      %678 = sbr.rel (0) target = $region17
    $region16: #{tpu_custom_call.1} parent=1 // pred_region
      %679 = dma.done [#allocation4], 24576
    $region17: #{tpu_custom_call.1} parent=1 // pred_fallthru
      _
    %680 = vsyncpa [#allocation3], 1
    %681 = vsyncpa [#allocation4], 1

</llo_original>
